<compile_context>
chip_gen: v7x
topology: tpu7x:2x2x1
jax: 0.10.0
libtpu: 0.0.40
codegen_flags: <defaults>
</compile_context>

<pallas_src>
import functools

import jax
import jax.numpy as jnp
from jax.experimental import pallas as pl
from jax.experimental.pallas import tpu as pltpu


def _round_up(x, m):
    return (x + m - 1) // m * m


def _glu_kernel(x_ref, wv_ref, wg_ref, bv_ref, bg_ref, o_ref,
                accx_ref, accg_ref, *, act_fn):
    """Fused GLU: value/gate matmuls + bias (in acc init) + value * act(gate)."""
    k = pl.program_id(2)

    @pl.when(k == 0)
    def _init():
        # Fold the bias into accumulator init (removes two adds from the
        # epilogue and drops the bias from the finalize critical path).
        accx_ref[...] = jnp.broadcast_to(
            bv_ref[...].astype(jnp.float32), accx_ref.shape)
        accg_ref[...] = jnp.broadcast_to(
            bg_ref[...].astype(jnp.float32), accg_ref.shape)

    x_blk = x_ref[...]  # load once, feed both MXU ops
    accx_ref[...] += jnp.dot(x_blk, wv_ref[...],
                             preferred_element_type=jnp.float32)
    accg_ref[...] += jnp.dot(x_blk, wg_ref[...],
                             preferred_element_type=jnp.float32)

    @pl.when(k == pl.num_programs(2) - 1)
    def _epilogue():
        # Epilogue entirely in f32 (v5e VPU/EUP have no bf16 path); cast only
        # at the final store.
        xv = accx_ref[...]
        gv = accg_ref[...]
        o_ref[...] = (xv * act_fn(gv)).astype(o_ref.dtype)


def glu_pallas(x, w, b, *, activation=jax.nn.silu, matmul_dtype=jnp.bfloat16,
               tm=None, tn=None, tk=None):
    """GLU forward.  x: (..., dim_in); w: (dim_in, 2*dim_out); b: (2*dim_out,)."""
    *lead, dim_in = x.shape
    two_dout = w.shape[1]
    dim_out = two_dout // 2
    assert w.shape == (dim_in, two_dout) and two_dout == 2 * dim_out
    assert b.shape == (two_dout,)

    if matmul_dtype is None:
        matmul_dtype = x.dtype

    M = 1
    for d in lead:
        M *= d
    x2 = x.reshape(M, dim_in).astype(matmul_dtype)

    # ---- tile selection -----------------------------------------------------
    # K: prefer big tiles (fewer grid steps); full extent is always layout-legal.
    if tk is None:
        tk = next((c for c in (512, 256, 128) if dim_in % c == 0), dim_in)
    assert dim_in % tk == 0, "tk must divide dim_in"
    # M: pad rows to the tile (handles ragged batch*seq); cap at 256 so large
    # problems keep several parallel row blocks (v7x has 2 TensorCores).
    if tm is None:
        tm = min(256, _round_up(M, 8))
    M_pad = _round_up(M, tm)
    if M_pad != M:
        x2 = jnp.pad(x2, ((0, M_pad - M), (0, 0)))

    # N / weight-half selection.
    if tn is None:
        tn = next((c for c in (256, 128) if dim_out % c == 0), None)
    if tn is not None and dim_out % tn == 0 and tn % 128 == 0:
        # Fast path: keep W intact; the value/gate halves are picked purely via
        # index_map block-column offsets -> no HBM copy of W.
        gate_off = dim_out // tn
        wv = wg = w.astype(matmul_dtype)
        bv = bg = b.reshape(1, two_dout).astype(jnp.float32)
    else:
        # Fallback for small / non-128-aligned dim_out: full-width halves
        # (block == full array dim keeps the layout legal).
        tn = dim_out
        gate_off = 0
        w_mm = w.astype(matmul_dtype)
        wv, wg = w_mm[:, :dim_out], w_mm[:, dim_out:]
        b32 = b.astype(jnp.float32)
        bv = b32[:dim_out].reshape(1, dim_out)
        bg = b32[dim_out:].reshape(1, dim_out)

    grid = (M_pad // tm, dim_out // tn, dim_in // tk)
    kernel = functools.partial(_glu_kernel, act_fn=activation)

    out = pl.pallas_call(
        kernel,
        out_shape=jax.ShapeDtypeStruct((M_pad, dim_out), x.dtype),
        grid_spec=pltpu.PrefetchScalarGridSpec(
            num_scalar_prefetch=0,
            grid=grid,
            in_specs=[
                pl.BlockSpec((tm, tk), lambda i, j, k: (i, k)),             # x
                pl.BlockSpec((tk, tn), lambda i, j, k: (k, j)),             # W value
                pl.BlockSpec((tk, tn), lambda i, j, k: (k, j + gate_off)),  # W gate
                pl.BlockSpec((1, tn), lambda i, j, k: (0, j)),              # b value
                pl.BlockSpec((1, tn), lambda i, j, k: (0, j + gate_off)),   # b gate
            ],
            out_specs=pl.BlockSpec((tm, tn), lambda i, j, k: (i, j)),
            scratch_shapes=[
                pltpu.VMEM((tm, tn), jnp.float32),
                pltpu.VMEM((tm, tn), jnp.float32),
            ],
        ),
        compiler_params=pltpu.CompilerParams(
            dimension_semantics=("parallel", "parallel", "arbitrary")
        ),
    )(x2, wv, wg, bv, bg)

    if M_pad != M:
        out = out[:M]
    return out.reshape(*lead, dim_out)


def glu_reference(x, w, b, activation=jax.nn.silu):
    y = jnp.dot(x, w) + b
    xv, gv = jnp.split(y, 2, axis=-1)
    return xv * activation(gv)


if __name__ == "__main__":
    # Small, deterministic example: x is (batch, seq, dim_in).
    batch, seq, dim_in, dim_out = 2, 8, 256, 128

    key = jax.random.PRNGKey(0)
    kx, kw, kb = jax.random.split(key, 3)

    x = jax.random.normal(kx, (batch, seq, dim_in), dtype=jnp.float32)

    # Deterministic nn.Linear-style init: U(-1/sqrt(dim_in), 1/sqrt(dim_in)).
    bound = 1.0 / (dim_in ** 0.5)
    w = jax.random.uniform(kw, (dim_in, 2 * dim_out), jnp.float32, -bound, bound)
    b = jax.random.uniform(kb, (2 * dim_out,), jnp.float32, -bound, bound)

    ref = glu_reference(x, w, b)

    # Exact f32 matmul path (tight check).
    out_f32 = jax.block_until_ready(glu_pallas(x, w, b, matmul_dtype=jnp.float32))
    assert out_f32.shape == (batch, seq, dim_out)
    assert jnp.allclose(out_f32, ref, atol=1e-4, rtol=1e-4), "f32 path mismatch"

    # Default bf16-matmul / f32-accumulate path (full-rate MXU on v6e/v7x).
    out_bf16 = jax.block_until_ready(glu_pallas(x, w, b))
    assert out_bf16.shape == (batch, seq, dim_out)
    assert jnp.allclose(out_bf16, ref, atol=2e-2, rtol=2e-2), "bf16 path mismatch"

    print("KERNEL_OK")
</pallas_src>

<mosaic_0001>
module attributes {stable_mosaic.version = 11 : i64} {
  func.func @_glu_kernel(%arg0: i32, %arg1: i32, %arg2: i32, %arg3: memref<16x256xf32, #tpu.memory_space<vmem>>, %arg4: memref<256x128xf32, #tpu.memory_space<vmem>>, %arg5: memref<256x128xf32, #tpu.memory_space<vmem>>, %arg6: memref<1x128xf32, #tpu.memory_space<vmem>>, %arg7: memref<1x128xf32, #tpu.memory_space<vmem>>, %arg8: memref<16x128xf32, #tpu.memory_space<vmem>>, %arg9: memref<16x128xf32, #tpu.memory_space<vmem>>, %arg10: memref<16x128xf32, #tpu.memory_space<vmem>>) attributes {dimension_semantics = [#tpu.dimension_semantics<parallel>, #tpu.dimension_semantics<parallel>, #tpu.dimension_semantics<arbitrary>], iteration_bounds = array<i64: 1, 1, 1>, scalar_prefetch = 0 : i64, scratch_operands = 2 : i64, tpu.core_type = #tpu.core_type<tc>, window_params = [{transform_indices = @transform_0, window_bounds = array<i64: 16, 256>}, {transform_indices = @transform_1, window_bounds = array<i64: 256, 128>}, {transform_indices = @transform_2, window_bounds = array<i64: 256, 128>}, {transform_indices = @transform_3, window_bounds = array<i64: 1, 128>}, {transform_indices = @transform_4, window_bounds = array<i64: 1, 128>}, {transform_indices = @transform_5, window_bounds = array<i64: 16, 128>}]} {
    %c0_i32 = arith.constant 0 : i32
    %0 = arith.cmpi eq, %arg2, %c0_i32 : i32
    %1 = arith.extui %0 : i1 to i32
    %c0_i32_0 = arith.constant 0 : i32
    %2 = arith.cmpi ne, %1, %c0_i32_0 : i32
    scf.if %2 {
      %c0_17 = arith.constant 0 : index
      %c0_18 = arith.constant 0 : index
      %17 = vector.load %arg6[%c0_17, %c0_18] : memref<1x128xf32, #tpu.memory_space<vmem>>, vector<1x128xf32>
      %18 = vector.shape_cast %17 : vector<1x128xf32> to vector<1x128xf32>
      %19 = vector.broadcast %18 : vector<1x128xf32> to vector<16x128xf32>
      %c0_19 = arith.constant 0 : index
      %c0_20 = arith.constant 0 : index
      %20 = vector.load %arg9[%c0_19, %c0_20] : memref<16x128xf32, #tpu.memory_space<vmem>>, vector<16x128xf32>
      tpu.vector_store %arg9[%c0_19, %c0_20], %19 {strides = array<i32>} : memref<16x128xf32, #tpu.memory_space<vmem>>, vector<16x128xf32>,
      %c0_21 = arith.constant 0 : index
      %c0_22 = arith.constant 0 : index
      %21 = vector.load %arg7[%c0_21, %c0_22] : memref<1x128xf32, #tpu.memory_space<vmem>>, vector<1x128xf32>
      %22 = vector.shape_cast %21 : vector<1x128xf32> to vector<1x128xf32>
      %23 = vector.broadcast %22 : vector<1x128xf32> to vector<16x128xf32>
      %c0_23 = arith.constant 0 : index
      %c0_24 = arith.constant 0 : index
      %24 = vector.load %arg10[%c0_23, %c0_24] : memref<16x128xf32, #tpu.memory_space<vmem>>, vector<16x128xf32>
      tpu.vector_store %arg10[%c0_23, %c0_24], %23 {strides = array<i32>} : memref<16x128xf32, #tpu.memory_space<vmem>>, vector<16x128xf32>,
    } else {
    }
    %c0 = arith.constant 0 : index
    %c0_1 = arith.constant 0 : index
    %3 = vector.load %arg3[%c0, %c0_1] : memref<16x256xf32, #tpu.memory_space<vmem>>, vector<16x256xf32>
    %c0_2 = arith.constant 0 : index
    %c0_3 = arith.constant 0 : index
    %4 = vector.load %arg9[%c0_2, %c0_3] : memref<16x128xf32, #tpu.memory_space<vmem>>, vector<16x128xf32>
    %c0_4 = arith.constant 0 : index
    %c0_5 = arith.constant 0 : index
    %5 = vector.load %arg4[%c0_4, %c0_5] : memref<256x128xf32, #tpu.memory_space<vmem>>, vector<256x128xf32>
    %cst = arith.constant dense<0.000000e+00> : vector<16x128xf32>
    %6 = tpu.matmul %3, %5, %cst {dimension_numbers = #tpu.dot_dimension_numbers<[1], [0], [0], [1], [0, 0, 1, 1], [], []>} : vector<16x256xf32>, vector<256x128xf32>, vector<16x128xf32> -> vector<16x128xf32>
    %7 = arith.addf %4, %6 : vector<16x128xf32>
    %c0_6 = arith.constant 0 : index
    %c0_7 = arith.constant 0 : index
    %8 = vector.load %arg9[%c0_6, %c0_7] : memref<16x128xf32, #tpu.memory_space<vmem>>, vector<16x128xf32>
    tpu.vector_store %arg9[%c0_6, %c0_7], %7 {strides = array<i32>} : memref<16x128xf32, #tpu.memory_space<vmem>>, vector<16x128xf32>,
    %c0_8 = arith.constant 0 : index
    %c0_9 = arith.constant 0 : index
    %9 = vector.load %arg10[%c0_8, %c0_9] : memref<16x128xf32, #tpu.memory_space<vmem>>, vector<16x128xf32>
    %c0_10 = arith.constant 0 : index
    %c0_11 = arith.constant 0 : index
    %10 = vector.load %arg5[%c0_10, %c0_11] : memref<256x128xf32, #tpu.memory_space<vmem>>, vector<256x128xf32>
    %cst_12 = arith.constant dense<0.000000e+00> : vector<16x128xf32>
    %11 = tpu.matmul %3, %10, %cst_12 {dimension_numbers = #tpu.dot_dimension_numbers<[1], [0], [0], [1], [0, 0, 1, 1], [], []>} : vector<16x256xf32>, vector<256x128xf32>, vector<16x128xf32> -> vector<16x128xf32>
    %12 = arith.addf %9, %11 : vector<16x128xf32>
    %c0_13 = arith.constant 0 : index
    %c0_14 = arith.constant 0 : index
    %13 = vector.load %arg10[%c0_13, %c0_14] : memref<16x128xf32, #tpu.memory_space<vmem>>, vector<16x128xf32>
    tpu.vector_store %arg10[%c0_13, %c0_14], %12 {strides = array<i32>} : memref<16x128xf32, #tpu.memory_space<vmem>>, vector<16x128xf32>,
    %c0_i32_15 = arith.constant 0 : i32
    %14 = arith.cmpi eq, %arg2, %c0_i32_15 : i32
    %15 = arith.extui %14 : i1 to i32
    %c0_i32_16 = arith.constant 0 : i32
    %16 = arith.cmpi ne, %15, %c0_i32_16 : i32
    scf.if %16 {
      %c0_17 = arith.constant 0 : index
      %c0_18 = arith.constant 0 : index
      %17 = vector.load %arg9[%c0_17, %c0_18] : memref<16x128xf32, #tpu.memory_space<vmem>>, vector<16x128xf32>
      %c0_19 = arith.constant 0 : index
      %c0_20 = arith.constant 0 : index
      %18 = vector.load %arg10[%c0_19, %c0_20] : memref<16x128xf32, #tpu.memory_space<vmem>>, vector<16x128xf32>
      %19 = arith.negf %18 : vector<16x128xf32>
      %20 = math.exp %19 : vector<16x128xf32>
      %cst_21 = arith.constant 1.000000e+00 : f32
      %21 = vector.broadcast %cst_21 : f32 to vector<16x128xf32>
      %22 = arith.addf %21, %20 : vector<16x128xf32>
      %23 = arith.divf %21, %22 : vector<16x128xf32>
      %24 = arith.mulf %18, %23 : vector<16x128xf32>
      %25 = arith.mulf %17, %24 : vector<16x128xf32>
      %c0_22 = arith.constant 0 : index
      %c0_23 = arith.constant 0 : index
      %26 = vector.load %arg8[%c0_22, %c0_23] : memref<16x128xf32, #tpu.memory_space<vmem>>, vector<16x128xf32>
      tpu.vector_store %arg8[%c0_22, %c0_23], %25 {strides = array<i32>} : memref<16x128xf32, #tpu.memory_space<vmem>>, vector<16x128xf32>,
    } else {
    }
    return
  }
  func.func @transform_0(%arg0: i32, %arg1: i32, %arg2: i32) -> (i32, i32) {
    %c0_i32 = arith.constant 0 : i32
    return %arg0, %arg2 : i32, i32
  }
  func.func @transform_1(%arg0: i32, %arg1: i32, %arg2: i32) -> (i32, i32) {
    %c0_i32 = arith.constant 0 : i32
    return %arg2, %arg1 : i32, i32
  }
  func.func @transform_2(%arg0: i32, %arg1: i32, %arg2: i32) -> (i32, i32) {
    %c1_i32 = arith.constant 1 : i32
    %0 = arith.addi %arg1, %c1_i32 : i32
    %c0_i32 = arith.constant 0 : i32
    return %arg2, %0 : i32, i32
  }
  func.func @transform_3(%arg0: i32, %arg1: i32, %arg2: i32) -> (i32, i32) {
    %c0_i32 = arith.constant 0 : i32
    %c0_i32_0 = arith.constant 0 : i32
    return %c0_i32, %arg1 : i32, i32
  }
  func.func @transform_4(%arg0: i32, %arg1: i32, %arg2: i32) -> (i32, i32) {
    %c1_i32 = arith.constant 1 : i32
    %0 = arith.addi %arg1, %c1_i32 : i32
    %c0_i32 = arith.constant 0 : i32
    %c0_i32_0 = arith.constant 0 : i32
    return %c0_i32, %0 : i32, i32
  }
  func.func @transform_5(%arg0: i32, %arg1: i32, %arg2: i32) -> (i32, i32) {
    %c0_i32 = arith.constant 0 : i32
    return %arg0, %arg1 : i32, i32
  }
}

</mosaic_0001>

<llo_original>
// kernel: tpu_custom_call.1
$region0: #{tpu_custom_call.1}
  #allocation0 [shape = 'u32[]', space=smem, size = 0x4, offset = 0x4, fixed_abs, tag = 'smem constant byte address 0x4 - core index']
  #allocation1 [shape = 'u32[144,128]{1,0:T(1,128)}', space=vmem, size = 0x12000, scoped, tag = 'internal scratch']
  #allocation2 [shape = 'f32[16,128]{1,0:T(8,128)}', space=vmem, size = 0x2000, scoped, tag = 'scratch operand']
  #allocation3 [shape = 'f32[16,128]{1,0:T(8,128)}', space=vmem, size = 0x2000, scoped, tag = 'scratch operand']
  %s0 = inlined_call_operand.hbm [shape: f32[16,256], index: 0, kind: input, shape index: {}]
  %s1 = inlined_call_operand.hbm [shape: f32[256,256], index: 1, kind: input, shape index: {}]
  %s2 = inlined_call_operand.hbm [shape: f32[256,256], index: 2, kind: input, shape index: {}]
  %s3 = inlined_call_operand.vmem [shape: f32[1,256], index: 3, kind: input, shape index: {}]
  %s4 = inlined_call_operand.vmem [shape: f32[1,256], index: 4, kind: input, shape index: {}]
  %s5 = inlined_call_operand.hbm [shape: f32[16,128], index: 5, kind: output, shape index: {}]
  %s6 = sld [smem:[#allocation0]]
  $region50: #{tpu_custom_call.1} parent=0
    _
  %s8 = ssub.s32 1, %s6
  %s9 = scalar_select 0, %s8, %s6
  $region1: #{tpu_custom_call.1} parent=0
    #allocation4 [shape = 'u8[16384]{0}', space=vmem, size = 0x4000, scoped, tag = 'input window, operand 0, single buffered']
    #allocation5 [shape = 's32[1]{0}', space=sflag, size = 0x4, scoped, tag = 'scoped memory for tpu_custom_call.1']
    #allocation6 [shape = 's32[1]{0}', space=sflag, size = 0x4, scoped, tag = 'scoped memory for tpu_custom_call.1']
    #allocation7 [shape = 'u8[131072]{0}', space=vmem, size = 0x20000, scoped, tag = 'input window, operand 1, single buffered']
    #allocation8 [shape = 's32[1]{0}', space=sflag, size = 0x4, scoped, tag = 'scoped memory for tpu_custom_call.1']
    #allocation9 [shape = 'u8[131072]{0}', space=vmem, size = 0x20000, scoped, tag = 'input window, operand 2, single buffered']
    #allocation10 [shape = 'u8[8192]{0}', space=vmem, size = 0x2000, scoped, tag = 'output window, operand 0, single buffered']
    %10 = vsyncpa [#allocation5], 0
    %11 = vsyncpa [#allocation8], 0
    %12 = vsyncpa [#allocation6], 0
    // Predicated region
    $region2: #{tpu_custom_call.1} parent=1 // pred_check
      _
    $region3: #{tpu_custom_call.1} parent=1 // pred_check_branch
      %14 = sbr.rel (0) target = $region5
    $region4: #{tpu_custom_call.1} parent=1 // pred_region
      %s16 = ssub.s32 512, 512
      %17 = vsyncadd [#allocation5], %s16
      %s18 = sshll.u32 [#allocation4], 4
      %s19 = int_to_ptr.vmem [resolvable:$true] %s18
      %24 = dma.hbm_to_vmem [thread:$0]  %s0, 512, %s19, [#allocation5], 256, 256, 16
    $region5: #{tpu_custom_call.1} parent=1 // pred_fallthru
      _
    // Predicated region
    $region6: #{tpu_custom_call.1} parent=1 // pred_check
      _
    $region7: #{tpu_custom_call.1} parent=1 // pred_check_branch
      %26 = sbr.rel (0) target = $region9
    $region8: #{tpu_custom_call.1} parent=1 // pred_region
      %s28 = ssub.s32 4096, 4096
      %29 = vsyncadd [#allocation8], %s28
      %s30 = sshll.u32 [#allocation7], 4
      %s31 = int_to_ptr.vmem [resolvable:$true] %s30
      %36 = dma.hbm_to_vmem [thread:$0]  %s1, 4096, %s31, [#allocation8], 256, 128, 8
    $region9: #{tpu_custom_call.1} parent=1 // pred_fallthru
      _
    // Predicated region
    $region10: #{tpu_custom_call.1} parent=1 // pred_check
      _
    $region11: #{tpu_custom_call.1} parent=1 // pred_check_branch
      %38 = sbr.rel (0) target = $region13
    $region12: #{tpu_custom_call.1} parent=1 // pred_region
      %s39 = sadd.s32 0, 1
      %s41 = ssub.s32 4096, 4096
      %42 = vsyncadd [#allocation8], %s41
      %s43 = smul.addr %s39, 128
      %s44 = scalar_lea.hbm %s2, %s43
      %s45 = sshll.u32 [#allocation9], 4
      %s46 = int_to_ptr.vmem [resolvable:$true] %s45
      %51 = dma.hbm_to_vmem [thread:$0]  %s44, 4096, %s46, [#allocation8], 256, 128, 8
    $region13: #{tpu_custom_call.1} parent=1 // pred_fallthru
      _
    // Predicated region
    $region14: #{tpu_custom_call.1} parent=1 // pred_check
      _
    $region15: #{tpu_custom_call.1} parent=1 // pred_check_branch
      %53 = sbr.rel (0) target = $region17
    $region16: #{tpu_custom_call.1} parent=1 // pred_region
      _
    $region17: #{tpu_custom_call.1} parent=1 // pred_fallthru
      _
    // Predicated region
    $region18: #{tpu_custom_call.1} parent=1 // pred_check
      _
    $region19: #{tpu_custom_call.1} parent=1 // pred_check_branch
      %55 = sbr.rel (0) target = $region21
    $region20: #{tpu_custom_call.1} parent=1 // pred_region
      %s56 = sadd.s32 0, 1
      %p57 = scmp.lt.s32.totalorder %s56, 1
      %s58 = scalar_select %p57, %s56, 1
      %s59 = scalar_lea.vmem %s4, %s58
      %s60 = sadd.s32 0, 1
    $region21: #{tpu_custom_call.1} parent=1 // pred_fallthru
      _
    // Predicated region
    $region22: #{tpu_custom_call.1} parent=1 // pred_check
      _
    $region23: #{tpu_custom_call.1} parent=1 // pred_check_branch
      %62 = sbr.rel (0) target = $region25
    $region24: #{tpu_custom_call.1} parent=1 // pred_region
      %63 = dma.done [#allocation5], 512
    $region25: #{tpu_custom_call.1} parent=1 // pred_fallthru
      _
    // Predicated region
    $region26: #{tpu_custom_call.1} parent=1 // pred_check
      _
    $region27: #{tpu_custom_call.1} parent=1 // pred_check_branch
      %65 = sbr.rel (0) target = $region29
    $region28: #{tpu_custom_call.1} parent=1 // pred_region
      %66 = dma.done [#allocation8], 4096
    $region29: #{tpu_custom_call.1} parent=1 // pred_fallthru
      _
    // Predicated region
    $region30: #{tpu_custom_call.1} parent=1 // pred_check
      _
    $region31: #{tpu_custom_call.1} parent=1 // pred_check_branch
      %68 = sbr.rel (0) target = $region33
    $region32: #{tpu_custom_call.1} parent=1 // pred_region
      %69 = dma.done [#allocation8], 4096
    $region33: #{tpu_custom_call.1} parent=1 // pred_fallthru
      _
    %s70 = sadd.s32 0, 1
    %p71 = scmp.lt.s32.totalorder %s70, 1
    %s72 = scalar_select %p71, %s70, 1
    %s73 = scalar_lea.vmem %s4, %s72
    %s74 = sadd.s32 0, 1
    %s75 = sadd.s32 0, 1
    %p76 = scmp.lt.s32.totalorder %s75, 1
    %s77 = scalar_select %p76, %s75, 1
    %s78 = scalar_lea.vmem %s4, %s77
    %s79 = sadd.s32 0, 1
    %p80 = scmp.eq.s32.totalorder 0, 0
    // Predicated region
    $region34: #{tpu_custom_call.1} parent=1 // pred_check
      %p81 = pneg %p80
    $region35: #{tpu_custom_call.1} parent=1 // pred_check_branch
      %83 = sbr.rel (%p81) target = $region37
    $region36: #{tpu_custom_call.1} parent=1 // pred_region
      %v84 = vld [vmem:[%s3] sm:$0x1]
      %v86 = vlaneseq
      %v87 = vshrl.u32 %v86, 7
      %v88 = vsub.s32 0, %v87
      %v89 = vrot.slane %v84, %v88
      %91 = vst [vmem:[#allocation2] sm:$0xff] %v89
      %92 = vst [vmem:[#allocation2 + $0x8] sm:$0xff] %v89
      %v93 = vld [vmem:[%s78] sm:$0x1]
      %v95 = vlaneseq
      %v96 = vshrl.u32 %v95, 7
      %v97 = vsub.s32 0, %v96
      %v98 = vrot.slane %v93, %v97
      %100 = vst [vmem:[#allocation3] sm:$0xff] %v98
      %101 = vst [vmem:[#allocation3 + $0x8] sm:$0xff] %v98
    $region37: #{tpu_custom_call.1} parent=1 // pred_fallthru
      _
    %v102 = vld [vmem:[#allocation4] sm:$0xff]
    %v103 = vld [vmem:[#allocation4 + $0x8] sm:$0xff]
    %v104 = vld [vmem:[#allocation4 + $0x10] sm:$0xff]
    %v105 = vld [vmem:[#allocation4 + $0x18] sm:$0xff]
    %v106 = vld [vmem:[#allocation2] sm:$0xff]
    %v107 = vld [vmem:[#allocation2 + $0x8] sm:$0xff]
    %v108 = vld [vmem:[#allocation7] sm:$0xff]
    %v109 = vld [vmem:[#allocation7 + $0x8] sm:$0xff]
    %v110 = vld [vmem:[#allocation7 + $0x10] sm:$0xff]
    %v111 = vld [vmem:[#allocation7 + $0x18] sm:$0xff]
    %v112 = vld [vmem:[#allocation7 + $0x20] sm:$0xff]
    %v113 = vld [vmem:[#allocation7 + $0x28] sm:$0xff]
    %v114 = vld [vmem:[#allocation7 + $0x30] sm:$0xff]
    %v115 = vld [vmem:[#allocation7 + $0x38] sm:$0xff]
    %v116 = vld [vmem:[#allocation7 + $0x40] sm:$0xff]
    %v117 = vld [vmem:[#allocation7 + $0x48] sm:$0xff]
    %v118 = vld [vmem:[#allocation7 + $0x50] sm:$0xff]
    %v119 = vld [vmem:[#allocation7 + $0x58] sm:$0xff]
    %v120 = vld [vmem:[#allocation7 + $0x60] sm:$0xff]
    %v121 = vld [vmem:[#allocation7 + $0x68] sm:$0xff]
    %v122 = vld [vmem:[#allocation7 + $0x70] sm:$0xff]
    %v123 = vld [vmem:[#allocation7 + $0x78] sm:$0xff]
    %v124 = vld [vmem:[#allocation7 + $0x80] sm:$0xff]
    %v125 = vld [vmem:[#allocation7 + $0x88] sm:$0xff]
    %v126 = vld [vmem:[#allocation7 + $0x90] sm:$0xff]
    %v127 = vld [vmem:[#allocation7 + $0x98] sm:$0xff]
    %v128 = vld [vmem:[#allocation7 + $0xa0] sm:$0xff]
    %v129 = vld [vmem:[#allocation7 + $0xa8] sm:$0xff]
    %v130 = vld [vmem:[#allocation7 + $0xb0] sm:$0xff]
    %v131 = vld [vmem:[#allocation7 + $0xb8] sm:$0xff]
    %v132 = vld [vmem:[#allocation7 + $0xc0] sm:$0xff]
    %v133 = vld [vmem:[#allocation7 + $0xc8] sm:$0xff]
    %v134 = vld [vmem:[#allocation7 + $0xd0] sm:$0xff]
    %v135 = vld [vmem:[#allocation7 + $0xd8] sm:$0xff]
    %v136 = vld [vmem:[#allocation7 + $0xe0] sm:$0xff]
    %v137 = vld [vmem:[#allocation7 + $0xe8] sm:$0xff]
    %v138 = vld [vmem:[#allocation7 + $0xf0] sm:$0xff]
    %v139 = vld [vmem:[#allocation7 + $0xf8] sm:$0xff]
    %140 = vmatprep.subr.mxu0 0.0
    %141 = vmatpush1.msra.mxu0 %v108
    %142 = vmatprep.subr.mxu0 0.0
    %143 = vmatpush1.msra.mxu0 %v109
    %144 = vmatprep.subr.mxu0 0.0
    %145 = vmatpush1.msra.mxu0 %v110
    %146 = vmatprep.subr.mxu0 0.0
    %147 = vmatpush1.msra.mxu0 %v111
    %148 = vmatprep.subr.mxu0 0.0
    %149 = vmatpush1.msra.mxu0 %v112
    %150 = vmatprep.subr.mxu0 0.0
    %151 = vmatpush1.msra.mxu0 %v113
    %152 = vmatprep.subr.mxu0 0.0
    %153 = vmatpush1.msra.mxu0 %v114
    %154 = vmatprep.subr.mxu0 0.0
    %155 = vmatpush1.msra.mxu0 %v115
    %156 = vmatprep.subr.mxu0 0.0
    %157 = vmatpush1.msra.mxu0 %v116
    %158 = vmatprep.subr.mxu0 0.0
    %159 = vmatpush1.msra.mxu0 %v117
    %160 = vmatprep.subr.mxu0 0.0
    %161 = vmatpush1.msra.mxu0 %v118
    %162 = vmatprep.subr.mxu0 0.0
    %163 = vmatpush1.msra.mxu0 %v119
    %164 = vmatprep.subr.mxu0 0.0
    %165 = vmatpush1.msra.mxu0 %v120
    %166 = vmatprep.subr.mxu0 0.0
    %167 = vmatpush1.msra.mxu0 %v121
    %168 = vmatprep.subr.mxu0 0.0
    %169 = vmatpush1.msra.mxu0 %v122
    %170 = vmatprep.subr.mxu0 0.0
    %171 = vmatpush1.msra.mxu0 %v123
    %172 = vmatprep.subr.mxu0 0.0
    %173 = vmatpush1.msra.mxu0 %v124
    %174 = vmatprep.subr.mxu0 0.0
    %175 = vmatpush1.msra.mxu0 %v125
    %176 = vmatprep.subr.mxu0 0.0
    %177 = vmatpush1.msra.mxu0 %v126
    %178 = vmatprep.subr.mxu0 0.0
    %179 = vmatpush1.msra.mxu0 %v127
    %180 = vmatprep.subr.mxu0 0.0
    %181 = vmatpush1.msra.mxu0 %v128
    %182 = vmatprep.subr.mxu0 0.0
    %183 = vmatpush1.msra.mxu0 %v129
    %184 = vmatprep.subr.mxu0 0.0
    %185 = vmatpush1.msra.mxu0 %v130
    %186 = vmatprep.subr.mxu0 0.0
    %187 = vmatpush1.msra.mxu0 %v131
    %188 = vmatprep.subr.mxu0 0.0
    %189 = vmatpush1.msra.mxu0 %v132
    %190 = vmatprep.subr.mxu0 0.0
    %191 = vmatpush1.msra.mxu0 %v133
    %192 = vmatprep.subr.mxu0 0.0
    %193 = vmatpush1.msra.mxu0 %v134
    %194 = vmatprep.subr.mxu0 0.0
    %195 = vmatpush1.msra.mxu0 %v135
    %196 = vmatprep.subr.mxu0 0.0
    %197 = vmatpush1.msra.mxu0 %v136
    %198 = vmatprep.subr.mxu0 0.0
    %199 = vmatpush1.msra.mxu0 %v137
    %200 = vmatprep.subr.mxu0 0.0
    %201 = vmatpush1.msra.mxu0 %v138
    %202 = vmatprep.subr.mxu0 0.0
    %203 = vmatpush1.msra.mxu0 %v139
    %204 = vmatprep.mubr.f32.mxu0 %v103
    %205 = vmatmul.mubr.f32.gmra.mrb[0].mxu0 %v102
    %v206 = vpop.f32.mrb[0].mxu0
    %v207 = vadd.f32 0.0, %v206
    %v208 = vpop.f32.mrb[0].mxu0
    %209 = vmatprep.mubr.f32.mxu0 %v105
    %210 = vmatmul.mubr.f32.gmra.mrb[0].mxu0 %v104
    %v211 = vpop.f32.mrb[0].mxu0
    %v212 = vadd.f32 0.0, %v211
    %v213 = vpop.f32.mrb[0].mxu0
    %214 = vdwg.mxu0
    %v215 = vadd.f32 %v106, %v207
    %v216 = vadd.f32 %v107, %v212
    %217 = vst [vmem:[#allocation2] sm:$0xff] %v215
    %218 = vst [vmem:[#allocation2 + $0x8] sm:$0xff] %v216
    %v219 = vld [vmem:[#allocation3] sm:$0xff]
    %v220 = vld [vmem:[#allocation3 + $0x8] sm:$0xff]
    %v221 = vld [vmem:[#allocation9] sm:$0xff]
    %v222 = vld [vmem:[#allocation9 + $0x8] sm:$0xff]
    %v223 = vld [vmem:[#allocation9 + $0x10] sm:$0xff]
    %v224 = vld [vmem:[#allocation9 + $0x18] sm:$0xff]
    %v225 = vld [vmem:[#allocation9 + $0x20] sm:$0xff]
    %v226 = vld [vmem:[#allocation9 + $0x28] sm:$0xff]
    %v227 = vld [vmem:[#allocation9 + $0x30] sm:$0xff]
    %v228 = vld [vmem:[#allocation9 + $0x38] sm:$0xff]
    %v229 = vld [vmem:[#allocation9 + $0x40] sm:$0xff]
    %v230 = vld [vmem:[#allocation9 + $0x48] sm:$0xff]
    %v231 = vld [vmem:[#allocation9 + $0x50] sm:$0xff]
    %v232 = vld [vmem:[#allocation9 + $0x58] sm:$0xff]
    %v233 = vld [vmem:[#allocation9 + $0x60] sm:$0xff]
    %v234 = vld [vmem:[#allocation9 + $0x68] sm:$0xff]
    %v235 = vld [vmem:[#allocation9 + $0x70] sm:$0xff]
    %v236 = vld [vmem:[#allocation9 + $0x78] sm:$0xff]
    %v237 = vld [vmem:[#allocation9 + $0x80] sm:$0xff]
    %v238 = vld [vmem:[#allocation9 + $0x88] sm:$0xff]
    %v239 = vld [vmem:[#allocation9 + $0x90] sm:$0xff]
    %v240 = vld [vmem:[#allocation9 + $0x98] sm:$0xff]
    %v241 = vld [vmem:[#allocation9 + $0xa0] sm:$0xff]
    %v242 = vld [vmem:[#allocation9 + $0xa8] sm:$0xff]
    %v243 = vld [vmem:[#allocation9 + $0xb0] sm:$0xff]
    %v244 = vld [vmem:[#allocation9 + $0xb8] sm:$0xff]
    %v245 = vld [vmem:[#allocation9 + $0xc0] sm:$0xff]
    %v246 = vld [vmem:[#allocation9 + $0xc8] sm:$0xff]
    %v247 = vld [vmem:[#allocation9 + $0xd0] sm:$0xff]
    %v248 = vld [vmem:[#allocation9 + $0xd8] sm:$0xff]
    %v249 = vld [vmem:[#allocation9 + $0xe0] sm:$0xff]
    %v250 = vld [vmem:[#allocation9 + $0xe8] sm:$0xff]
    %v251 = vld [vmem:[#allocation9 + $0xf0] sm:$0xff]
    %v252 = vld [vmem:[#allocation9 + $0xf8] sm:$0xff]
    %253 = vmatprep.subr.mxu0 0.0
    %254 = vmatpush1.msra.mxu0 %v221
    %255 = vmatprep.subr.mxu0 0.0
    %256 = vmatpush1.msra.mxu0 %v222
    %257 = vmatprep.subr.mxu0 0.0
    %258 = vmatpush1.msra.mxu0 %v223
    %259 = vmatprep.subr.mxu0 0.0
    %260 = vmatpush1.msra.mxu0 %v224
    %261 = vmatprep.subr.mxu0 0.0
    %262 = vmatpush1.msra.mxu0 %v225
    %263 = vmatprep.subr.mxu0 0.0
    %264 = vmatpush1.msra.mxu0 %v226
    %265 = vmatprep.subr.mxu0 0.0
    %266 = vmatpush1.msra.mxu0 %v227
    %267 = vmatprep.subr.mxu0 0.0
    %268 = vmatpush1.msra.mxu0 %v228
    %269 = vmatprep.subr.mxu0 0.0
    %270 = vmatpush1.msra.mxu0 %v229
    %271 = vmatprep.subr.mxu0 0.0
    %272 = vmatpush1.msra.mxu0 %v230
    %273 = vmatprep.subr.mxu0 0.0
    %274 = vmatpush1.msra.mxu0 %v231
    %275 = vmatprep.subr.mxu0 0.0
    %276 = vmatpush1.msra.mxu0 %v232
    %277 = vmatprep.subr.mxu0 0.0
    %278 = vmatpush1.msra.mxu0 %v233
    %279 = vmatprep.subr.mxu0 0.0
    %280 = vmatpush1.msra.mxu0 %v234
    %281 = vmatprep.subr.mxu0 0.0
    %282 = vmatpush1.msra.mxu0 %v235
    %283 = vmatprep.subr.mxu0 0.0
    %284 = vmatpush1.msra.mxu0 %v236
    %285 = vmatprep.subr.mxu0 0.0
    %286 = vmatpush1.msra.mxu0 %v237
    %287 = vmatprep.subr.mxu0 0.0
    %288 = vmatpush1.msra.mxu0 %v238
    %289 = vmatprep.subr.mxu0 0.0
    %290 = vmatpush1.msra.mxu0 %v239
    %291 = vmatprep.subr.mxu0 0.0
    %292 = vmatpush1.msra.mxu0 %v240
    %293 = vmatprep.subr.mxu0 0.0
    %294 = vmatpush1.msra.mxu0 %v241
    %295 = vmatprep.subr.mxu0 0.0
    %296 = vmatpush1.msra.mxu0 %v242
    %297 = vmatprep.subr.mxu0 0.0
    %298 = vmatpush1.msra.mxu0 %v243
    %299 = vmatprep.subr.mxu0 0.0
    %300 = vmatpush1.msra.mxu0 %v244
    %301 = vmatprep.subr.mxu0 0.0
    %302 = vmatpush1.msra.mxu0 %v245
    %303 = vmatprep.subr.mxu0 0.0
    %304 = vmatpush1.msra.mxu0 %v246
    %305 = vmatprep.subr.mxu0 0.0
    %306 = vmatpush1.msra.mxu0 %v247
    %307 = vmatprep.subr.mxu0 0.0
    %308 = vmatpush1.msra.mxu0 %v248
    %309 = vmatprep.subr.mxu0 0.0
    %310 = vmatpush1.msra.mxu0 %v249
    %311 = vmatprep.subr.mxu0 0.0
    %312 = vmatpush1.msra.mxu0 %v250
    %313 = vmatprep.subr.mxu0 0.0
    %314 = vmatpush1.msra.mxu0 %v251
    %315 = vmatprep.subr.mxu0 0.0
    %316 = vmatpush1.msra.mxu0 %v252
    %317 = vmatprep.mubr.f32.mxu0 %v103
    %318 = vmatmul.mubr.f32.gmra.mrb[0].mxu0 %v102
    %v319 = vpop.f32.mrb[0].mxu0
    %v320 = vadd.f32 0.0, %v319
    %v321 = vpop.f32.mrb[0].mxu0
    %322 = vmatprep.mubr.f32.mxu0 %v105
    %323 = vmatmul.mubr.f32.gmra.mrb[0].mxu0 %v104
    %v324 = vpop.f32.mrb[0].mxu0
    %v325 = vadd.f32 0.0, %v324
    %v326 = vpop.f32.mrb[0].mxu0
    %327 = vdwg.mxu0
    %v328 = vadd.f32 %v219, %v320
    %v329 = vadd.f32 %v220, %v325
    %330 = vst [vmem:[#allocation3] sm:$0xff] %v328
    %331 = vst [vmem:[#allocation3 + $0x8] sm:$0xff] %v329
    // Predicated region
    $region38: #{tpu_custom_call.1} parent=1 // pred_check
      %p332 = pneg %p80
    $region39: #{tpu_custom_call.1} parent=1 // pred_check_branch
      %334 = sbr.rel (%p332) target = $region41
    $region40: #{tpu_custom_call.1} parent=1 // pred_region
      %v335 = vld [vmem:[#allocation2] sm:$0xff]
      %v336 = vld [vmem:[#allocation2 + $0x8] sm:$0xff]
      %v337 = vld [vmem:[#allocation3] sm:$0xff]
      %v338 = vld [vmem:[#allocation3 + $0x8] sm:$0xff]
      %v339 = vxor.u32 %v337, 2147483648
      %v340 = vxor.u32 %v338, 2147483648
      %v341 = vmul.f32 %v339, 1.442695
      %v342 = vpow.pop %v341
      %v343 = vmul.f32 %v340, 1.442695
      %v344 = vpow.pop %v343
      %v345 = vadd.f32 %v342, 1.0
      %v346 = vadd.f32 %v344, 1.0
      %v347 = vrcp.pop %v345
      %v348 = vmul.f32 1.0, %v347
      %v349 = vrcp.pop %v346
      %v350 = vmul.f32 1.0, %v349
      %v351 = vmul.f32 %v337, %v348
      %v352 = vmul.f32 %v338, %v350
      %v353 = vmul.f32 %v335, %v351
      %v354 = vmul.f32 %v336, %v352
      %355 = vst [vmem:[#allocation10] sm:$0xff] %v353
      %356 = vst [vmem:[#allocation10 + $0x8] sm:$0xff] %v354
    $region41: #{tpu_custom_call.1} parent=1 // pred_fallthru
      _
    // Predicated region
    $region42: #{tpu_custom_call.1} parent=1 // pred_check
      _
    $region43: #{tpu_custom_call.1} parent=1 // pred_check_branch
      %358 = sbr.rel (0) target = $region45
    $region44: #{tpu_custom_call.1} parent=1 // pred_region
      %s360 = ssub.s32 256, 256
      %361 = vsyncadd [#allocation6], %s360
      %s362 = sshll.u32 [#allocation10], 4
      %s363 = int_to_ptr.vmem [resolvable:$true] %s362
      %368 = dma.vmem_to_hbm [thread:$0]  %s363, 256, %s5, [#allocation6], 128, 128, 8
    $region45: #{tpu_custom_call.1} parent=1 // pred_fallthru
      _
    // Predicated region
    $region46: #{tpu_custom_call.1} parent=1 // pred_check
      _
    $region47: #{tpu_custom_call.1} parent=1 // pred_check_branch
      %370 = sbr.rel (0) target = $region49
    $region48: #{tpu_custom_call.1} parent=1 // pred_region
      %371 = dma.done [#allocation6], 256
    $region49: #{tpu_custom_call.1} parent=1 // pred_fallthru
      _
    %372 = vsyncpa [#allocation5], 1
    %373 = vsyncpa [#allocation8], 1
    %374 = vsyncpa [#allocation6], 1

</llo_original>
